<compile_context>
chip_gen: v7x
topology: tpu7x:2x2x1
jax: 0.10.0
libtpu: 0.0.40
codegen_flags: <defaults>
</compile_context>

<pallas_src>
import functools

import jax
import jax.numpy as jnp
from jax.experimental import pallas as pl
from jax.experimental.pallas import tpu as pltpu


_LANES = 512                      # lane-dense last dim (multiple of 128)
_MIN_PALLAS_BYTES = 256 * 1024    # below this, fused XLA elementwise wins


# ----------------------------------------------------------------------------
# Fused elementwise kernel: both streams in, both streams out.
# ----------------------------------------------------------------------------
def _ytmt_kernel(l_ref, r_ref, ol_ref, or_ref):
    l = l_ref[...]
    r = r_ref[...]
    lp = jnp.maximum(l, 0.0)   # relu(l)
    rp = jnp.maximum(r, 0.0)   # relu(r)
    # relu(x) - x is the (non-negative) "negative part"; streams exchange it.
    ol_ref[...] = (lp + (rp - r)).astype(ol_ref.dtype)   # out_lp + out_rn
    or_ref[...] = (rp + (lp - l)).astype(or_ref.dtype)   # out_rp + out_ln


def _ytmt_jnp(l, r):
    lp = jnp.maximum(l, 0.0)
    rp = jnp.maximum(r, 0.0)
    return lp + (rp - r), rp + (lp - l)


# ----------------------------------------------------------------------------
# Per-chip tiling / compiler-params configuration.
# ----------------------------------------------------------------------------
@functools.lru_cache(maxsize=None)
def _chip_config():
    try:
        kind = jax.devices()[0].device_kind.lower()
    except Exception:
        kind = ""
    if "v7" in kind or "7x" in kind:
        # v7x: 2 TensorCores/chip, 64 MiB VMEM/TC -> split rows across cores,
        # 4 MiB/operand blocks (32 MiB double-buffered), ~48 MiB scoped VMEM.
        return {
            "max_block_rows": 2048,
            "vmem_limit_bytes": 48 * 1024 * 1024,
            "semantics": (pltpu.CORE_PARALLEL,),
        }
    if "v6" in kind:
        # v6e: 1 TC, 128 MiB physical VMEM -> big blocks, raised scoped limit.
        return {
            "max_block_rows": 2048,
            "vmem_limit_bytes": 64 * 1024 * 1024,
            "semantics": ("parallel",),
        }
    # v5e / v5p / v4 / unknown: stay inside an explicit 32 MiB scoped budget
    # (v5e's 16 MiB default would be hit exactly by 2 MiB/operand blocks).
    return {
        "max_block_rows": 1024,
        "vmem_limit_bytes": 32 * 1024 * 1024,
        "semantics": ("parallel",),
    }


# ----------------------------------------------------------------------------
# Pallas path on a lane-dense (rows, _LANES) slab.
# ----------------------------------------------------------------------------
def _ytmt_pallas_2d(l2, r2):
    rows, lanes = l2.shape
    dtype = l2.dtype
    itemsize = jnp.dtype(dtype).itemsize
    cfg = _chip_config()

    # Single full-dims block for small slabs (allowed even if rows % 8 != 0),
    # otherwise fixed-size blocks with a cdiv grid; Pallas masks the partial
    # last block, so no padded rows are DMA'd or computed.
    block_rows = rows if rows <= cfg["max_block_rows"] else cfg["max_block_rows"]
    grid_rows = pl.cdiv(rows, block_rows)
    n = rows * lanes

    spec = pl.BlockSpec((block_rows, lanes), lambda i: (i, 0))
    return pl.pallas_call(
        _ytmt_kernel,
        out_shape=(
            jax.ShapeDtypeStruct((rows, lanes), dtype),
            jax.ShapeDtypeStruct((rows, lanes), dtype),
        ),
        grid_spec=pltpu.PrefetchScalarGridSpec(
            num_scalar_prefetch=0,
            grid=(grid_rows,),
            in_specs=[spec, spec],
            out_specs=[spec, spec],
        ),
        compiler_params=pltpu.CompilerParams(
            dimension_semantics=cfg["semantics"],
            vmem_limit_bytes=cfg["vmem_limit_bytes"],
        ),
        cost_estimate=pl.CostEstimate(
            flops=6 * n,                       # 2 relu + 2 sub + 2 add per elem
            transcendentals=0,
            bytes_accessed=4 * n * itemsize,   # 2 reads + 2 writes
        ),
    )(l2, r2)


# ----------------------------------------------------------------------------
# Public wrapper.
# ----------------------------------------------------------------------------
def ytmt_block_add_symmetric(input_l, input_r, *, force_pallas=False):
    assert input_l.shape == input_r.shape, (input_l.shape, input_r.shape)
    assert input_l.dtype == input_r.dtype, (input_l.dtype, input_r.dtype)
    orig_shape = input_l.shape
    n = input_l.size
    itemsize = jnp.dtype(input_l.dtype).itemsize

    # Small-tensor fallback: kernel dispatch + pipeline prologue would dominate.
    if not force_pallas and n * itemsize < _MIN_PALLAS_BYTES:
        return _ytmt_jnp(input_l, input_r)

    lanes = _LANES
    n_aligned = (n // lanes) * lanes
    if n_aligned == 0:
        return _ytmt_jnp(input_l, input_r)

    l_flat = input_l.reshape(-1)
    r_flat = input_r.reshape(-1)

    if n_aligned == n:
        # Divisible case: metadata-only reshapes, no pad / slice copies.
        ol2, or2 = _ytmt_pallas_2d(l_flat.reshape(-1, lanes),
                                   r_flat.reshape(-1, lanes))
        return ol2.reshape(orig_shape), or2.reshape(orig_shape)

    # Non-lane-divisible: aligned prefix through the kernel, <512-element tail
    # with plain jnp; avoids full-array padded HBM copies.
    ol2, or2 = _ytmt_pallas_2d(l_flat[:n_aligned].reshape(-1, lanes),
                               r_flat[:n_aligned].reshape(-1, lanes))
    tail_l, tail_r = _ytmt_jnp(l_flat[n_aligned:], r_flat[n_aligned:])
    out_l = jnp.concatenate([ol2.reshape(-1), tail_l]).reshape(orig_shape)
    out_r = jnp.concatenate([or2.reshape(-1), tail_r]).reshape(orig_shape)
    return out_l, out_r


# ----------------------------------------------------------------------------
# Test driver.
# ----------------------------------------------------------------------------
if __name__ == "__main__":
    key = jax.random.PRNGKey(0)
    kl, kr = jax.random.split(key)

    B, C, H, W = 2, 4, 16, 16
    input_l = jax.random.normal(kl, (B, C, H, W), jnp.float32)
    input_r = jax.random.normal(kr, (B, C, H, W), jnp.float32)

    fwd = jax.jit(ytmt_block_add_symmetric, static_argnames=("force_pallas",))

    # 1) Pallas path (forced; this test shape is below the production
    #    small-tensor fallback threshold).
    out_l, out_r = fwd(input_l, input_r, force_pallas=True)
    jax.block_until_ready((out_l, out_r))
    assert out_l.shape == (B, C, H, W) and out_r.shape == (B, C, H, W)
    ref_l, ref_r = _ytmt_jnp(input_l, input_r)
    assert jnp.allclose(out_l, ref_l, atol=1e-6, rtol=1e-6)
    assert jnp.allclose(out_r, ref_r, atol=1e-6, rtol=1e-6)

    # 2) Non-lane-divisible shape -> exercises aligned-prefix + jnp-tail path.
    shape2 = (2, 3, 17, 16)  # 1632 elements, not a multiple of 512
    l2 = jax.random.normal(kl, shape2, jnp.float32)
    r2 = jax.random.normal(kr, shape2, jnp.float32)
    o2l, o2r = fwd(l2, r2, force_pallas=True)
    jax.block_until_ready((o2l, o2r))
    r2l, r2r = _ytmt_jnp(l2, r2)
    assert jnp.allclose(o2l, r2l, atol=1e-6, rtol=1e-6)
    assert jnp.allclose(o2r, r2r, atol=1e-6, rtol=1e-6)

    # 3) Default path (small-tensor XLA fallback) still matches.
    o3l, o3r = fwd(input_l, input_r)
    jax.block_until_ready((o3l, o3r))
    assert jnp.allclose(o3l, ref_l, atol=1e-6, rtol=1e-6)
    assert jnp.allclose(o3r, ref_r, atol=1e-6, rtol=1e-6)

    print("KERNEL_OK")
</pallas_src>

<mosaic_0001>
module attributes {stable_mosaic.version = 11 : i64} {
  func.func @_ytmt_kernel(%arg0: i32, %arg1: memref<4x512xf32, #tpu.memory_space<vmem>>, %arg2: memref<4x512xf32, #tpu.memory_space<vmem>>, %arg3: memref<4x512xf32, #tpu.memory_space<vmem>>, %arg4: memref<4x512xf32, #tpu.memory_space<vmem>>) attributes {dimension_semantics = [#tpu.dimension_semantics<parallel>], iteration_bounds = array<i64: 1>, scalar_prefetch = 0 : i64, scratch_operands = 0 : i64, tpu.core_type = #tpu.core_type<tc>, window_params = [{transform_indices = @transform_0, window_bounds = array<i64: 4, 512>}, {transform_indices = @transform_1, window_bounds = array<i64: 4, 512>}, {transform_indices = @transform_2, window_bounds = array<i64: 4, 512>}, {transform_indices = @transform_3, window_bounds = array<i64: 4, 512>}]} {
    %c0 = arith.constant 0 : index
    %c0_0 = arith.constant 0 : index
    %0 = vector.load %arg1[%c0, %c0_0] : memref<4x512xf32, #tpu.memory_space<vmem>>, vector<4x512xf32>
    %c0_1 = arith.constant 0 : index
    %c0_2 = arith.constant 0 : index
    %1 = vector.load %arg2[%c0_1, %c0_2] : memref<4x512xf32, #tpu.memory_space<vmem>>, vector<4x512xf32>
    %cst = arith.constant 0.000000e+00 : f32
    %2 = vector.broadcast %cst : f32 to vector<4x512xf32>
    %3 = arith.maximumf %0, %2 : vector<4x512xf32>
    %cst_3 = arith.constant 0.000000e+00 : f32
    %4 = vector.broadcast %cst_3 : f32 to vector<4x512xf32>
    %5 = arith.maximumf %1, %4 : vector<4x512xf32>
    %6 = arith.subf %5, %1 : vector<4x512xf32>
    %7 = arith.addf %3, %6 : vector<4x512xf32>
    %c0_4 = arith.constant 0 : index
    %c0_5 = arith.constant 0 : index
    %8 = vector.load %arg3[%c0_4, %c0_5] : memref<4x512xf32, #tpu.memory_space<vmem>>, vector<4x512xf32>
    tpu.vector_store %arg3[%c0_4, %c0_5], %7 {strides = array<i32>} : memref<4x512xf32, #tpu.memory_space<vmem>>, vector<4x512xf32>,
    %9 = arith.subf %3, %0 : vector<4x512xf32>
    %10 = arith.addf %5, %9 : vector<4x512xf32>
    %c0_6 = arith.constant 0 : index
    %c0_7 = arith.constant 0 : index
    %11 = vector.load %arg4[%c0_6, %c0_7] : memref<4x512xf32, #tpu.memory_space<vmem>>, vector<4x512xf32>
    tpu.vector_store %arg4[%c0_6, %c0_7], %10 {strides = array<i32>} : memref<4x512xf32, #tpu.memory_space<vmem>>, vector<4x512xf32>,
    return
  }
  func.func @transform_0(%arg0: i32) -> (i32, i32) {
    %c0_i32 = arith.constant 0 : i32
    %c0_i32_0 = arith.constant 0 : i32
    return %arg0, %c0_i32 : i32, i32
  }
  func.func @transform_1(%arg0: i32) -> (i32, i32) {
    %c0_i32 = arith.constant 0 : i32
    %c0_i32_0 = arith.constant 0 : i32
    return %arg0, %c0_i32 : i32, i32
  }
  func.func @transform_2(%arg0: i32) -> (i32, i32) {
    %c0_i32 = arith.constant 0 : i32
    %c0_i32_0 = arith.constant 0 : i32
    return %arg0, %c0_i32 : i32, i32
  }
  func.func @transform_3(%arg0: i32) -> (i32, i32) {
    %c0_i32 = arith.constant 0 : i32
    %c0_i32_0 = arith.constant 0 : i32
    return %arg0, %c0_i32 : i32, i32
  }
}

</mosaic_0001>

<llo_original>
// kernel: ytmt_block_add_symmetric.1
$region0: #{ytmt_block_add_symmetric.1}
  #allocation0 [shape = 'u32[]', space=smem, size = 0x4, offset = 0x4, fixed_abs, tag = 'smem constant byte address 0x4 - core index']
  #allocation1 [shape = 'u32[144,128]{1,0:T(1,128)}', space=vmem, size = 0x12000, scoped, tag = 'internal scratch']
  %s0 = inlined_call_operand.vmem [shape: f32[4,512], index: 0, kind: input, shape index: {}]
  %s1 = inlined_call_operand.vmem [shape: f32[4,512], index: 1, kind: input, shape index: {}]
  %s2 = inlined_call_operand.vmem [shape: f32[4,512], index: 2, kind: output, shape index: {0}]
  %s3 = inlined_call_operand.vmem [shape: f32[4,512], index: 3, kind: output, shape index: {1}]
  %4 = xla_tuple %s2, %s3
  %s5 = sld [smem:[#allocation0]]
  $region26: #{ytmt_block_add_symmetric.1} parent=0
    _
  %s7 = ssub.s32 1, %s5
  %s8 = scalar_select 0, %s7, %s5
  // Predicated region
  $region2: #{ytmt_block_add_symmetric.1} parent=0 // pred_check
    _
  $region3: #{ytmt_block_add_symmetric.1} parent=0 // pred_check_branch
    %10 = sbr.rel (0) target = $region5
  $region4: #{ytmt_block_add_symmetric.1} parent=0 // pred_region
    _
  $region5: #{ytmt_block_add_symmetric.1} parent=0 // pred_fallthru
    _
  // Predicated region
  $region6: #{ytmt_block_add_symmetric.1} parent=0 // pred_check
    _
  $region7: #{ytmt_block_add_symmetric.1} parent=0 // pred_check_branch
    %12 = sbr.rel (0) target = $region9
  $region8: #{ytmt_block_add_symmetric.1} parent=0 // pred_region
    _
  $region9: #{ytmt_block_add_symmetric.1} parent=0 // pred_fallthru
    _
  %v13 = vld [vmem:[%s0] sm:$0xff]
  %v14 = vld [vmem:[%s0 + $0x8] sm:$0xff]
  %v15 = vld [vmem:[%s1] sm:$0xff]
  %v16 = vld [vmem:[%s1 + $0x8] sm:$0xff]
  %v17 = vmax.f32 %v13, 0.0
  %v18 = vmax.f32 %v14, 0.0
  %v19 = vmax.f32 %v15, 0.0
  %v20 = vmax.f32 %v16, 0.0
  %v21 = vsub.f32 %v19, %v15
  %v22 = vsub.f32 %v20, %v16
  %v23 = vadd.f32 %v17, %v21
  %v24 = vadd.f32 %v18, %v22
  %25 = vst [vmem:[%s2] sm:$0xff] %v23
  %26 = vst [vmem:[%s2 + $0x8] sm:$0xff] %v24
  %v27 = vsub.f32 %v17, %v13
  %v28 = vsub.f32 %v18, %v14
  %v29 = vadd.f32 %v19, %v27
  %v30 = vadd.f32 %v20, %v28
  %31 = vst [vmem:[%s3] sm:$0xff] %v29
  %32 = vst [vmem:[%s3 + $0x8] sm:$0xff] %v30
  // Predicated region
  $region10: #{ytmt_block_add_symmetric.1} parent=0 // pred_check
    _
  $region11: #{ytmt_block_add_symmetric.1} parent=0 // pred_check_branch
    %34 = sbr.rel (0) target = $region13
  $region12: #{ytmt_block_add_symmetric.1} parent=0 // pred_region
    _
  $region13: #{ytmt_block_add_symmetric.1} parent=0 // pred_fallthru
    _
  // Predicated region
  $region14: #{ytmt_block_add_symmetric.1} parent=0 // pred_check
    _
  $region15: #{ytmt_block_add_symmetric.1} parent=0 // pred_check_branch
    %36 = sbr.rel (0) target = $region17
  $region16: #{ytmt_block_add_symmetric.1} parent=0 // pred_region
    _
  $region17: #{ytmt_block_add_symmetric.1} parent=0 // pred_fallthru
    _
  // Predicated region
  $region18: #{ytmt_block_add_symmetric.1} parent=0 // pred_check
    _
  $region19: #{ytmt_block_add_symmetric.1} parent=0 // pred_check_branch
    %38 = sbr.rel (0) target = $region21
  $region20: #{ytmt_block_add_symmetric.1} parent=0 // pred_region
    _
  $region21: #{ytmt_block_add_symmetric.1} parent=0 // pred_fallthru
    _
  // Predicated region
  $region22: #{ytmt_block_add_symmetric.1} parent=0 // pred_check
    _
  $region23: #{ytmt_block_add_symmetric.1} parent=0 // pred_check_branch
    %40 = sbr.rel (0) target = $region25
  $region24: #{ytmt_block_add_symmetric.1} parent=0 // pred_region
    _
  $region25: #{ytmt_block_add_symmetric.1} parent=0 // pred_fallthru
    _

</llo_original>
